<compile_context>
chip_gen: v7x
topology: tpu7x:2x2x1
jax: 0.10.0
libtpu: 0.0.40
codegen_flags: <defaults>
</compile_context>

<pallas_src>
import functools

import jax
import jax.numpy as jnp
from jax.experimental import pallas as pl
from jax.experimental.pallas import tpu as pltpu


def _round_up(x, m):
    return ((x + m - 1) // m) * m


def _gate_and_blend(x, z, size_p, approx):
    """x + sigmoid(z_gate) * (z_linear - x), halves of z are lane-aligned."""
    gate_logits = z[:, :size_p]
    nonlinear = z[:, size_p:]
    if approx:
        # exp on the EUP, approximate reciprocal also on the EUP slot.
        gate = pl.reciprocal(1.0 + jnp.exp(-gate_logits), approx=True)
    else:
        gate = jax.nn.sigmoid(gate_logits)
    # 3 VPU ops instead of 4.
    return x + gate * (nonlinear - x)


def _highway_resident_kernel(x_ref, w_ref, b_ref, o_ref, *, approx):
    """All layers unrolled; fused [gate|linear] weights resident in VMEM.

    x_ref: (TB, Sp)        batch tile
    w_ref: (N, Sp, 2*Sp)   per-layer fused RHS [W_gate | W_linear], (in, out)
    b_ref: (N, 1, 2*Sp)    per-layer fused bias (f32)
    o_ref: (TB, Sp)
    """
    size_p = x_ref.shape[1]
    n_layers = w_ref.shape[0]
    x = x_ref[...].astype(jnp.float32)
    for i in range(n_layers):  # static -> unrolled
        # One fused MXU matmul per layer: (TB, Sp) @ (Sp, 2Sp), f32 acc.
        z = jnp.dot(x.astype(w_ref.dtype), w_ref[i],
                    preferred_element_type=jnp.float32)
        z = z + b_ref[i].astype(jnp.float32)
        x = _gate_and_blend(x, z, size_p, approx)
    o_ref[...] = x.astype(o_ref.dtype)


def _highway_stream_kernel(x_ref, w_ref, b_ref, o_ref, x_acc, *, approx):
    """Layer axis in the grid (trailing, 'arbitrary'); weights streamed.

    x_ref: (TB, Sp)      w_ref: (1, Sp, 2*Sp)      b_ref: (1, 1, 2*Sp)
    o_ref: (TB, Sp)      x_acc: VMEM (TB, Sp) f32 running activation
    """
    size_p = x_ref.shape[1]
    layer = pl.program_id(1)

    @pl.when(layer == 0)
    def _():
        x_acc[...] = x_ref[...].astype(jnp.float32)

    x = x_acc[...]
    z = jnp.dot(x.astype(w_ref.dtype), w_ref[0],
                preferred_element_type=jnp.float32)
    z = z + b_ref[0].astype(jnp.float32)
    x_new = _gate_and_blend(x, z, size_p, approx)
    x_acc[...] = x_new

    @pl.when(layer == pl.num_programs(1) - 1)
    def _():
        o_ref[...] = x_new.astype(o_ref.dtype)


def highway(x, w_linear, b_linear, w_gate, b_gate, *, tile_b=None,
            matmul_dtype=jnp.bfloat16, approx_sigmoid=None,
            weight_resident_bytes=24 * 1024 * 1024,
            vmem_budget_bytes=40 * 1024 * 1024):
    """Highway forward (eval mode).

    x:   [B, S]
    w_*: [N, S, S]   pre-transposed to (in, out) so the kernel does x @ W
    b_*: [N, 1, S]
    matmul_dtype: MXU operand dtype. Default bf16 on all TPU generations
                  (f32 accumulation + f32 epilogue). Use jnp.float32 for the
                  exact path.
    """
    B, S = x.shape
    N = w_linear.shape[0]
    if matmul_dtype is None:
        matmul_dtype = jnp.float32
    if approx_sigmoid is None:
        approx_sigmoid = matmul_dtype != jnp.float32

    # --- host-side packing + padding --------------------------------------
    # Pad the feature dim to a 128-lane multiple so both halves of the fused
    # [W_gate | W_linear] output are lane-aligned in the kernel. Zero padding
    # is exact: padded activation columns stay 0 through every layer.
    Sp = _round_up(S, 128)

    def pad_w(w):
        return jnp.pad(w, ((0, 0), (0, Sp - S), (0, Sp - S)))

    def pad_b(b):
        return jnp.pad(b, ((0, 0), (0, 0), (0, Sp - S)))

    w_fused = jnp.concatenate([pad_w(w_gate), pad_w(w_linear)],
                              axis=-1).astype(matmul_dtype)      # (N, Sp, 2Sp)
    b_fused = jnp.concatenate([pad_b(b_gate), pad_b(b_linear)],
                              axis=-1).astype(jnp.float32)       # (N, 1, 2Sp)

    w_bytes = int(w_fused.size) * w_fused.dtype.itemsize
    b_bytes = int(b_fused.size) * 4
    # Resident path if both pipeline buffers of the full fused weights fit
    # comfortably (v7x has 64 MiB VMEM/TC); otherwise stream layer-by-layer.
    resident = 2 * (w_bytes + b_bytes) <= weight_resident_bytes

    in_itemsize = x.dtype.itemsize
    out_itemsize = x.dtype.itemsize
    if resident:
        fixed_bytes = 2 * (w_bytes + b_bytes)
        extra_row_bytes = 0
    else:
        per_layer = Sp * 2 * Sp * w_fused.dtype.itemsize + 2 * Sp * 4
        fixed_bytes = 2 * per_layer          # double-buffered layer slab
        extra_row_bytes = 4 * Sp             # x_acc f32 scratch

    # --- batch-tile selection from the VMEM footprint ----------------------
    row_bytes = (2 * in_itemsize * Sp        # input tile (2 pipeline buffers)
                 + 2 * out_itemsize * Sp     # output tile (2 pipeline buffers)
                 + 4 * Sp * 6                # f32 intermediates (x, z, gate, nl)
                 + extra_row_bytes)
    if tile_b is None:
        avail = max(vmem_budget_bytes - fixed_bytes, 8 * row_bytes)
        tile_b = min(2048, avail // row_bytes)
        tile_b = max(8, (tile_b // 8) * 8)
        if B > 8:
            # Guarantee >= 2 grid steps so both v7x TensorCores get work.
            tile_b = min(tile_b, _round_up((B + 1) // 2, 8))
        tile_b = min(tile_b, _round_up(B, 8))
    tile_b = max(8, _round_up(int(tile_b), 8))

    # Pad the batch to a tile multiple (avoids tiny-divisor pathologies);
    # padded rows are discarded after the call.
    Bp = _round_up(B, tile_b)
    xp = jnp.pad(x, ((0, Bp - B), (0, Sp - S)))
    grid_b = Bp // tile_b

    est_bytes = fixed_bytes + tile_b * row_bytes
    vmem_limit = int(min(max(est_bytes * 5 // 4 + (2 << 20), 32 << 20),
                         96 << 20))

    # --- pallas_call --------------------------------------------------------
    if resident:
        kernel = functools.partial(_highway_resident_kernel,
                                   approx=approx_sigmoid)
        out = pl.pallas_call(
            kernel,
            out_shape=jax.ShapeDtypeStruct((Bp, Sp), x.dtype),
            grid_spec=pltpu.PrefetchScalarGridSpec(
                num_scalar_prefetch=0,
                grid=(grid_b,),
                in_specs=[
                    pl.BlockSpec((tile_b, Sp), lambda i: (i, 0)),
                    pl.BlockSpec((N, Sp, 2 * Sp), lambda i: (0, 0, 0)),
                    pl.BlockSpec((N, 1, 2 * Sp), lambda i: (0, 0, 0)),
                ],
                out_specs=pl.BlockSpec((tile_b, Sp), lambda i: (i, 0)),
            ),
            compiler_params=pltpu.CompilerParams(
                dimension_semantics=("parallel",),
                vmem_limit_bytes=vmem_limit,
            ),
        )(xp, w_fused, b_fused)
    else:
        kernel = functools.partial(_highway_stream_kernel,
                                   approx=approx_sigmoid)
        out = pl.pallas_call(
            kernel,
            out_shape=jax.ShapeDtypeStruct((Bp, Sp), x.dtype),
            grid_spec=pltpu.PrefetchScalarGridSpec(
                num_scalar_prefetch=0,
                grid=(grid_b, N),
                in_specs=[
                    pl.BlockSpec((tile_b, Sp), lambda i, l: (i, 0)),
                    pl.BlockSpec((1, Sp, 2 * Sp), lambda i, l: (l, 0, 0)),
                    pl.BlockSpec((1, 1, 2 * Sp), lambda i, l: (l, 0, 0)),
                ],
                out_specs=pl.BlockSpec((tile_b, Sp), lambda i, l: (i, 0)),
                scratch_shapes=[pltpu.VMEM((tile_b, Sp), jnp.float32)],
            ),
            compiler_params=pltpu.CompilerParams(
                dimension_semantics=("parallel", "arbitrary"),
                vmem_limit_bytes=vmem_limit,
            ),
        )(xp, w_fused, b_fused)

    return out[:B, :S]


def highway_ref(x, w_linear, b_linear, w_gate, b_gate):
    """Pure-JAX reference (same math as the PyTorch module, eval mode)."""
    x = x.astype(jnp.float32)
    for i in range(w_linear.shape[0]):
        gate = jax.nn.sigmoid(x @ w_gate[i] + b_gate[i])
        nonlinear = x @ w_linear[i] + b_linear[i]
        x = gate * nonlinear + (1.0 - gate) * x
    return x


def _make_params(key, layer_num, size, batch):
    kx, kwl, kbl, kwg, kbg = jax.random.split(key, 5)
    bound = 1.0 / (size ** 0.5)  # nn.Linear default init range
    x = jax.random.normal(kx, (batch, size), dtype=jnp.float32)
    # Weights stored already transposed to (in, out) for x @ W.
    w_linear = jax.random.uniform(kwl, (layer_num, size, size),
                                  minval=-bound, maxval=bound,
                                  dtype=jnp.float32)
    b_linear = jax.random.uniform(kbl, (layer_num, 1, size),
                                  minval=-bound, maxval=bound,
                                  dtype=jnp.float32)
    w_gate = jax.random.uniform(kwg, (layer_num, size, size),
                                minval=-bound, maxval=bound,
                                dtype=jnp.float32)
    b_gate = jax.random.uniform(kbg, (layer_num, 1, size),
                                minval=-bound, maxval=bound,
                                dtype=jnp.float32)
    return x, w_linear, b_linear, w_gate, b_gate


if __name__ == "__main__":
    key = jax.random.PRNGKey(0)
    k1, k2 = jax.random.split(key, 2)

    # --- test 1: resident-weight path, 128-aligned shapes ------------------
    x, wl, bl, wg, bg = _make_params(k1, layer_num=2, size=128, batch=16)
    ref = highway_ref(x, wl, bl, wg, bg)

    # Exact path (f32 MXU operands + exact sigmoid).
    out_f32 = jax.block_until_ready(
        highway(x, wl, bl, wg, bg, matmul_dtype=jnp.float32))
    assert out_f32.shape == (16, 128)
    assert jnp.allclose(out_f32, ref, atol=1e-5, rtol=1e-5), "f32 mismatch"

    # Default fast path: bf16 MXU operands, f32 accumulation + epilogue.
    out_bf16 = jax.block_until_ready(highway(x, wl, bl, wg, bg))
    assert jnp.allclose(out_bf16, ref, atol=3e-2, rtol=3e-2), "bf16 mismatch"

    # --- test 2: forced weight-streaming path + padding path ----------------
    # Non-128-multiple feature width and non-multiple-of-8 batch exercise the
    # host-side zero padding; weight_resident_bytes=0 forces the layer-in-grid
    # streaming variant.
    x2, wl2, bl2, wg2, bg2 = _make_params(k2, layer_num=3, size=72, batch=13)
    ref2 = highway_ref(x2, wl2, bl2, wg2, bg2)
    out2 = jax.block_until_ready(
        highway(x2, wl2, bl2, wg2, bg2, matmul_dtype=jnp.float32,
                weight_resident_bytes=0))
    assert out2.shape == (13, 72)
    assert jnp.allclose(out2, ref2, atol=1e-5, rtol=1e-5), "stream mismatch"

    print("KERNEL_OK")
</pallas_src>

<mosaic_0001>
module attributes {stable_mosaic.version = 11 : i64} {
  func.func @_highway_resident_kernel(%arg0: i32, %arg1: memref<8x128xf32, #tpu.memory_space<vmem>>, %arg2: memref<2x128x256xf32, #tpu.memory_space<vmem>>, %arg3: memref<2x1x256xf32, #tpu.memory_space<vmem>>, %arg4: memref<8x128xf32, #tpu.memory_space<vmem>>) attributes {dimension_semantics = [#tpu.dimension_semantics<parallel>], iteration_bounds = array<i64: 2>, scalar_prefetch = 0 : i64, scratch_operands = 0 : i64, tpu.core_type = #tpu.core_type<tc>, window_params = [{transform_indices = @transform_0, window_bounds = array<i64: 8, 128>}, {pipeline_mode = #tpu.pipeline_mode<synchronous>, transform_indices = @transform_1, window_bounds = array<i64: 2, 128, 256>}, {pipeline_mode = #tpu.pipeline_mode<synchronous>, transform_indices = @transform_2, window_bounds = array<i64: 2, 1, 256>}, {transform_indices = @transform_3, window_bounds = array<i64: 8, 128>}]} {
    %c0 = arith.constant 0 : index
    %c0_0 = arith.constant 0 : index
    %0 = vector.load %arg1[%c0, %c0_0] : memref<8x128xf32, #tpu.memory_space<vmem>>, vector<8x128xf32>
    %c0_1 = arith.constant 0 : index
    %c0_2 = arith.constant 0 : index
    %c0_3 = arith.constant 0 : index
    %1 = vector.load %arg2[%c0_1, %c0_2, %c0_3] : memref<2x128x256xf32, #tpu.memory_space<vmem>>, vector<1x128x256xf32>
    %2 = vector.shape_cast %1 : vector<1x128x256xf32> to vector<128x256xf32>
    %cst = arith.constant dense<0.000000e+00> : vector<8x256xf32>
    %3 = tpu.matmul %0, %2, %cst {dimension_numbers = #tpu.dot_dimension_numbers<[1], [0], [0], [1], [0, 0, 1, 1], [], []>} : vector<8x128xf32>, vector<128x256xf32>, vector<8x256xf32> -> vector<8x256xf32>
    %c0_4 = arith.constant 0 : index
    %c0_5 = arith.constant 0 : index
    %c0_6 = arith.constant 0 : index
    %4 = vector.load %arg3[%c0_4, %c0_5, %c0_6] : memref<2x1x256xf32, #tpu.memory_space<vmem>>, vector<1x1x256xf32>
    %5 = vector.shape_cast %4 : vector<1x1x256xf32> to vector<1x256xf32>
    %6 = vector.broadcast %5 : vector<1x256xf32> to vector<8x256xf32>
    %7 = arith.addf %3, %6 : vector<8x256xf32>
    %8 = vector.extract_strided_slice %7 {offsets = [0, 0], sizes = [8, 128], strides = [1, 1]} : vector<8x256xf32> to vector<8x128xf32>
    %9 = vector.extract_strided_slice %7 {offsets = [0, 128], sizes = [8, 128], strides = [1, 1]} : vector<8x256xf32> to vector<8x128xf32>
    %10 = arith.negf %8 : vector<8x128xf32>
    %11 = math.exp %10 : vector<8x128xf32>
    %cst_7 = arith.constant 1.000000e+00 : f32
    %12 = vector.broadcast %cst_7 : f32 to vector<8x128xf32>
    %13 = arith.addf %12, %11 : vector<8x128xf32>
    %14 = arith.divf %12, %13 : vector<8x128xf32>
    %15 = arith.subf %9, %0 : vector<8x128xf32>
    %16 = arith.mulf %14, %15 : vector<8x128xf32>
    %17 = arith.addf %0, %16 : vector<8x128xf32>
    %c1 = arith.constant 1 : index
    %c0_8 = arith.constant 0 : index
    %c0_9 = arith.constant 0 : index
    %18 = vector.load %arg2[%c1, %c0_8, %c0_9] : memref<2x128x256xf32, #tpu.memory_space<vmem>>, vector<1x128x256xf32>
    %19 = vector.shape_cast %18 : vector<1x128x256xf32> to vector<128x256xf32>
    %cst_10 = arith.constant dense<0.000000e+00> : vector<8x256xf32>
    %20 = tpu.matmul %17, %19, %cst_10 {dimension_numbers = #tpu.dot_dimension_numbers<[1], [0], [0], [1], [0, 0, 1, 1], [], []>} : vector<8x128xf32>, vector<128x256xf32>, vector<8x256xf32> -> vector<8x256xf32>
    %c1_11 = arith.constant 1 : index
    %c0_12 = arith.constant 0 : index
    %c0_13 = arith.constant 0 : index
    %21 = vector.load %arg3[%c1_11, %c0_12, %c0_13] : memref<2x1x256xf32, #tpu.memory_space<vmem>>, vector<1x1x256xf32>
    %22 = vector.shape_cast %21 : vector<1x1x256xf32> to vector<1x256xf32>
    %23 = vector.broadcast %22 : vector<1x256xf32> to vector<8x256xf32>
    %24 = arith.addf %20, %23 : vector<8x256xf32>
    %25 = vector.extract_strided_slice %24 {offsets = [0, 0], sizes = [8, 128], strides = [1, 1]} : vector<8x256xf32> to vector<8x128xf32>
    %26 = vector.extract_strided_slice %24 {offsets = [0, 128], sizes = [8, 128], strides = [1, 1]} : vector<8x256xf32> to vector<8x128xf32>
    %27 = arith.negf %25 : vector<8x128xf32>
    %28 = math.exp %27 : vector<8x128xf32>
    %cst_14 = arith.constant 1.000000e+00 : f32
    %29 = vector.broadcast %cst_14 : f32 to vector<8x128xf32>
    %30 = arith.addf %29, %28 : vector<8x128xf32>
    %31 = arith.divf %29, %30 : vector<8x128xf32>
    %32 = arith.subf %26, %17 : vector<8x128xf32>
    %33 = arith.mulf %31, %32 : vector<8x128xf32>
    %34 = arith.addf %17, %33 : vector<8x128xf32>
    %c0_15 = arith.constant 0 : index
    %c0_16 = arith.constant 0 : index
    %35 = vector.load %arg4[%c0_15, %c0_16] : memref<8x128xf32, #tpu.memory_space<vmem>>, vector<8x128xf32>
    tpu.vector_store %arg4[%c0_15, %c0_16], %34 {strides = array<i32>} : memref<8x128xf32, #tpu.memory_space<vmem>>, vector<8x128xf32>,
    return
  }
  func.func @transform_0(%arg0: i32) -> (i32, i32) {
    %c0_i32 = arith.constant 0 : i32
    %c0_i32_0 = arith.constant 0 : i32
    return %arg0, %c0_i32 : i32, i32
  }
  func.func @transform_1(%arg0: i32) -> (i32, i32, i32) {
    %c0_i32 = arith.constant 0 : i32
    %c0_i32_0 = arith.constant 0 : i32
    %c0_i32_1 = arith.constant 0 : i32
    %c0_i32_2 = arith.constant 0 : i32
    return %c0_i32, %c0_i32_0, %c0_i32_1 : i32, i32, i32
  }
  func.func @transform_2(%arg0: i32) -> (i32, i32, i32) {
    %c0_i32 = arith.constant 0 : i32
    %c0_i32_0 = arith.constant 0 : i32
    %c0_i32_1 = arith.constant 0 : i32
    %c0_i32_2 = arith.constant 0 : i32
    return %c0_i32, %c0_i32_0, %c0_i32_1 : i32, i32, i32
  }
  func.func @transform_3(%arg0: i32) -> (i32, i32) {
    %c0_i32 = arith.constant 0 : i32
    %c0_i32_0 = arith.constant 0 : i32
    return %arg0, %c0_i32 : i32, i32
  }
}

</mosaic_0001>

<llo_original>
// kernel: tpu_custom_call.1
$region0: #{tpu_custom_call.1}
  #allocation0 [shape = 'u32[]', space=smem, size = 0x4, offset = 0x4, fixed_abs, tag = 'smem constant byte address 0x4 - core index']
  #allocation1 [shape = 'u32[144,128]{1,0:T(1,128)}', space=vmem, size = 0x12000, scoped, tag = 'internal scratch']
  %s0 = inlined_call_operand.hbm [shape: f32[16,128], index: 0, kind: input, shape index: {}]
  %s1 = inlined_call_operand.hbm [shape: f32[2,128,256], index: 1, kind: input, shape index: {}]
  %s2 = inlined_call_operand.vmem [shape: f32[2,1,256], index: 2, kind: input, shape index: {}]
  %s3 = inlined_call_operand.hbm [shape: f32[16,128], index: 3, kind: output, shape index: {}]
  %s4 = sld [smem:[#allocation0]]
  $region53: #{tpu_custom_call.1} parent=0
    _
  %s6 = ssub.s32 1, %s4
  %s7 = scalar_select 0, %s6, %s4
  $region1: #{tpu_custom_call.1} parent=0
    #allocation2 [shape = 'u8[8192]{0}', space=vmem, size = 0x2000, scoped, tag = 'input window, operand 0']
    #allocation3 [shape = 's32[2]{0}', space=sflag, size = 0x8, scoped, tag = 'scoped memory for tpu_custom_call.1']
    #allocation4 [shape = 's32[2]{0}', space=sflag, size = 0x8, scoped, tag = 'scoped memory for tpu_custom_call.1']
    #allocation5 [shape = 'u8[262144]{0}', space=vmem, size = 0x40000, scoped, tag = 'input window, operand 1, single buffered']
    #allocation6 [shape = 's32[1]{0}', space=sflag, size = 0x4, scoped, tag = 'scoped memory for tpu_custom_call.1']
    #allocation7 [shape = 'u8[8192]{0}', space=vmem, size = 0x2000, scoped, tag = 'output window, operand 0']
    %8 = vsyncpa [#allocation3], 0
    %s9 = scalar_lea.sflag [#allocation3], 1
    %10 = vsyncpa %s9, 0
    %11 = vsyncpa [#allocation6], 0
    %12 = vsyncpa [#allocation4], 0
    %s13 = scalar_lea.sflag [#allocation4], 1
    %14 = vsyncpa %s13, 0
    loop: start=0, step=1, limit=4
    $region2: #{tpu_custom_call.1} parent=1 // loop_pre_header
      _
    $region3: #{tpu_custom_call.1} parent=1 // loop_header
      %s16 = sphi 0, %s20
      %p17 = scmp.ge.s32.totalorder %s16, 4
      %s26 = sphi 0, %s28
      %s29 = sphi 0, %s26
      %s30 = sphi 0, %s29
      %s46 = sphi 0, %s30
      %s50 = sphi 0, %s50
      %s52 = sphi 0, %s50
      %s53 = sphi 0, %s52
      %s67 = sphi 0, %s53
      %s71 = sphi 0, %s71
      %s73 = sphi 0, %s71
      %s74 = sphi 0, %s73
      %s88 = sphi 0, %s74
      %s94 = sphi 0, %s96
      %s97 = sphi 0, %s94
      %s98 = sphi 0, %s97
      %s114 = sphi 0, %s98
    $region4: #{tpu_custom_call.1} parent=1 // loop_header_branch
      %19 = sbr.rel (%p17) target = $region8
    $region5: #{tpu_custom_call.1} parent=1 // loop_body
      %s21 = ssub.s32 %s16, 1
      %s22 = ssub.s32 %s16, 2
      %s23 = sadd.s32 %s16, 1
      %s24 = ssub.s32 %s16, %s23
      %p25 = scmp.eq.s32.totalorder %s24, 0
      %s27 = sadd.s32 %s26, 1
      %s28 = scalar_select %p25, %s26, %s27
      %p31 = pneg %p25
      %p32 = scmp.eq.s32.totalorder %s16, 1
      %p33 = por %p31, %p32
      %p34 = scmp.ne.s32.totalorder %s26, %s29
      %p35 = scmp.eq.s32.totalorder %s16, 0
      %p36 = por %p34, %p35
      %p37 = scmp.ne.s32.totalorder %s26, %s29
      %p38 = scmp.eq.s32.totalorder %s21, 1
      %p39 = por %p37, %p38
      %p40 = scmp.ne.s32.totalorder %s29, %s30
      %p41 = scmp.eq.s32.totalorder %s21, 0
      %p42 = por %p40, %p41
      %p43 = scmp.ne.s32.totalorder %s29, %s30
      %p44 = scmp.eq.s32.totalorder %s22, 1
      %p45 = por %p43, %p44
      %p47 = scmp.ne.s32.totalorder %s30, %s46
      %p48 = scmp.eq.s32.totalorder %s22, 0
      %p49 = por %p47, %p48
      %s51 = sadd.s32 %s50, 1
      %p54 = scmp.eq.s32.totalorder %s16, 1
      %p55 = scmp.ne.s32.totalorder %s50, %s52
      %p56 = scmp.eq.s32.totalorder %s16, 0
      %p57 = por %p55, %p56
      %p58 = scmp.ne.s32.totalorder %s50, %s52
      %p59 = scmp.eq.s32.totalorder %s21, 1
      %p60 = por %p58, %p59
      %p61 = scmp.ne.s32.totalorder %s52, %s53
      %p62 = scmp.eq.s32.totalorder %s21, 0
      %p63 = por %p61, %p62
      %p64 = scmp.ne.s32.totalorder %s52, %s53
      %p65 = scmp.eq.s32.totalorder %s22, 1
      %p66 = por %p64, %p65
      %p68 = scmp.ne.s32.totalorder %s53, %s67
      %p69 = scmp.eq.s32.totalorder %s22, 0
      %p70 = por %p68, %p69
      %s72 = sadd.s32 %s71, 1
      %p75 = scmp.eq.s32.totalorder %s16, 1
      %p76 = scmp.ne.s32.totalorder %s71, %s73
      %p77 = scmp.eq.s32.totalorder %s16, 0
      %p78 = por %p76, %p77
      %p79 = scmp.ne.s32.totalorder %s71, %s73
      %p80 = scmp.eq.s32.totalorder %s21, 1
      %p81 = por %p79, %p80
      %p82 = scmp.ne.s32.totalorder %s73, %s74
      %p83 = scmp.eq.s32.totalorder %s21, 0
      %p84 = por %p82, %p83
      %p85 = scmp.ne.s32.totalorder %s73, %s74
      %p86 = scmp.eq.s32.totalorder %s22, 1
      %p87 = por %p85, %p86
      %p89 = scmp.ne.s32.totalorder %s74, %s88
      %p90 = scmp.eq.s32.totalorder %s22, 0
      %p91 = por %p89, %p90
      %s92 = ssub.s32 %s16, %s23
      %p93 = scmp.eq.s32.totalorder %s92, 0
      %s95 = sadd.s32 %s94, 1
      %s96 = scalar_select %p93, %s94, %s95
      %p99 = pneg %p93
      %p100 = scmp.eq.s32.totalorder %s16, 1
      %p101 = por %p99, %p100
      %p102 = scmp.ne.s32.totalorder %s94, %s97
      %p103 = scmp.eq.s32.totalorder %s16, 0
      %p104 = por %p102, %p103
      %p105 = scmp.ne.s32.totalorder %s94, %s97
      %p106 = scmp.eq.s32.totalorder %s21, 1
      %p107 = por %p105, %p106
      %p108 = scmp.ne.s32.totalorder %s97, %s98
      %p109 = scmp.eq.s32.totalorder %s21, 0
      %p110 = por %p108, %p109
      %p111 = scmp.ne.s32.totalorder %s97, %s98
      %p112 = scmp.eq.s32.totalorder %s22, 1
      %p113 = por %p111, %p112
      %p115 = scmp.ne.s32.totalorder %s98, %s114
      %p116 = scmp.eq.s32.totalorder %s22, 0
      %p117 = por %p115, %p116
      %p118 = scmp.le.s32.totalorder 1, %s16
      %p119 = scmp.lt.s32.totalorder %s16, 3
      %p120 = pnand %p118, %p119
      %p121 = pneg %p120
      // Predicated region
      $region9: #{tpu_custom_call.1} parent=5 // pred_check
        _
      $region10: #{tpu_custom_call.1} parent=5 // pred_check_branch
        %123 = sbr.rel (%p120) target = $region12
      $region11: #{tpu_custom_call.1} parent=5 // pred_region
        %s124 = ssub.s32 %s16, 1
        // Predicated region
        $region13: #{tpu_custom_call.1} parent=11 // pred_check
          %p125 = pneg %p63
        $region14: #{tpu_custom_call.1} parent=11 // pred_check_branch
          %127 = sbr.rel (%p125) target = $region16
        $region15: #{tpu_custom_call.1} parent=11 // pred_region
          %s129 = ssub.s32 8192, 8192
          %130 = vsyncadd [#allocation6], %s129
          %s131 = sshll.u32 [#allocation5], 4
          %s132 = int_to_ptr.vmem [resolvable:$true] %s131
          %137 = dma.hbm_to_vmem [thread:$0]  %s1, 8192, %s132, [#allocation6], 256, 256, 16
        $region16: #{tpu_custom_call.1} parent=11 // pred_fallthru
          _
        // Predicated region
        $region17: #{tpu_custom_call.1} parent=11 // pred_check
          %p138 = pneg %p84
        $region18: #{tpu_custom_call.1} parent=11 // pred_check_branch
          %140 = sbr.rel (%p138) target = $region20
        $region19: #{tpu_custom_call.1} parent=11 // pred_region
          _
        $region20: #{tpu_custom_call.1} parent=11 // pred_fallthru
          _
      $region12: #{tpu_custom_call.1} parent=5 // pred_fallthru
        _
      %p141 = scmp.lt.s32.totalorder %s16, 2
      // Predicated region
      $region21: #{tpu_custom_call.1} parent=5 // pred_check
        %p142 = pneg %p141
      $region22: #{tpu_custom_call.1} parent=5 // pred_check_branch
        %144 = sbr.rel (%p142) target = $region24
      $region23: #{tpu_custom_call.1} parent=5 // pred_region
        // Predicated region
        $region25: #{tpu_custom_call.1} parent=23 // pred_check
          %p145 = pneg %p36
        $region26: #{tpu_custom_call.1} parent=23 // pred_check_branch
          %147 = sbr.rel (%p145) target = $region28
        $region27: #{tpu_custom_call.1} parent=23 // pred_region
          %s148 = sand.u32 %s26, 1
          %s149 = scalar_lea.sflag [#allocation3], %s148
          %s150 = sand.u32 %s26, 1
          %s151 = smul.addr %s150, 8
          %s152 = scalar_lea.vmem [#allocation2], %s151
          %s154 = ssub.s32 128, 128
          %155 = vsyncadd %s149, %s154
          %s156 = smul.addr %s16, 128
          %s157 = scalar_lea.hbm %s0, %s156
          %s159 = sshll.u32 %s152, 4
          %s160 = int_to_ptr.vmem [resolvable:$true] %s159
          %162 = dma.hbm_to_vmem [thread:$0]  %s157, 128, %s160, %s149
        $region28: #{tpu_custom_call.1} parent=23 // pred_fallthru
          _
      $region24: #{tpu_custom_call.1} parent=5 // pred_fallthru
        _
      %p163 = scmp.le.s32.totalorder 1, %s16
      %p164 = scmp.lt.s32.totalorder %s16, 3
      %p165 = pnand %p163, %p164
      %p166 = pneg %p165
      // Predicated region
      $region29: #{tpu_custom_call.1} parent=5 // pred_check
        _
      $region30: #{tpu_custom_call.1} parent=5 // pred_check_branch
        %168 = sbr.rel (%p165) target = $region32
      $region31: #{tpu_custom_call.1} parent=5 // pred_region
        %s169 = ssub.s32 %s16, 1
        %s170 = sand.u32 %s29, 1
        %s171 = scalar_lea.sflag [#allocation3], %s170
        %s172 = sand.u32 %s29, 1
        %s173 = smul.addr %s172, 8
        %s174 = scalar_lea.vmem [#allocation2], %s173
        // Predicated region
        $region33: #{tpu_custom_call.1} parent=31 // pred_check
          %p175 = pneg %p42
        $region34: #{tpu_custom_call.1} parent=31 // pred_check_branch
          %177 = sbr.rel (%p175) target = $region36
        $region35: #{tpu_custom_call.1} parent=31 // pred_region
          %178 = dma.done %s171, 128
        $region36: #{tpu_custom_call.1} parent=31 // pred_fallthru
          _
        // Predicated region
        $region37: #{tpu_custom_call.1} parent=31 // pred_check
          %p179 = pneg %p63
        $region38: #{tpu_custom_call.1} parent=31 // pred_check_branch
          %181 = sbr.rel (%p179) target = $region40
        $region39: #{tpu_custom_call.1} parent=31 // pred_region
          %182 = dma.done [#allocation6], 8192
        $region40: #{tpu_custom_call.1} parent=31 // pred_fallthru
          _
        %s183 = sand.u32 %s29, 1
        %s184 = scalar_lea.sflag [#allocation3], %s183
        %s185 = sand.u32 %s29, 1
        %s186 = smul.addr %s185, 8
        %s187 = scalar_lea.vmem [#allocation2], %s186
        %p188 = pneg %p42
        %p189 = pneg %p39
        %p190 = pneg %p63
        %p191 = pneg %p60
        %p192 = pneg %p84
        %p193 = pneg %p81
        %p194 = pneg %p110
        %p195 = pneg %p107
        %s196 = sand.u32 %s97, 1
        %s197 = scalar_lea.sflag [#allocation4], %s196
        %s198 = sand.u32 %s97, 1
        %s199 = smul.addr %s198, 8
        %s200 = scalar_lea.vmem [#allocation7], %s199
        %v201 = vld [vmem:[%s174] sm:$0xff]
        %v202 = vld [vmem:[#allocation5] sm:$0xff]
        %v203 = vld [vmem:[#allocation5 + $0x8] sm:$0xff]
        %v204 = vld [vmem:[#allocation5 + $0x10] sm:$0xff]
        %v205 = vld [vmem:[#allocation5 + $0x18] sm:$0xff]
        %v206 = vld [vmem:[#allocation5 + $0x20] sm:$0xff]
        %v207 = vld [vmem:[#allocation5 + $0x28] sm:$0xff]
        %v208 = vld [vmem:[#allocation5 + $0x30] sm:$0xff]
        %v209 = vld [vmem:[#allocation5 + $0x38] sm:$0xff]
        %v210 = vld [vmem:[#allocation5 + $0x40] sm:$0xff]
        %v211 = vld [vmem:[#allocation5 + $0x48] sm:$0xff]
        %v212 = vld [vmem:[#allocation5 + $0x50] sm:$0xff]
        %v213 = vld [vmem:[#allocation5 + $0x58] sm:$0xff]
        %v214 = vld [vmem:[#allocation5 + $0x60] sm:$0xff]
        %v215 = vld [vmem:[#allocation5 + $0x68] sm:$0xff]
        %v216 = vld [vmem:[#allocation5 + $0x70] sm:$0xff]
        %v217 = vld [vmem:[#allocation5 + $0x78] sm:$0xff]
        %v218 = vld [vmem:[#allocation5 + $0x80] sm:$0xff]
        %v219 = vld [vmem:[#allocation5 + $0x88] sm:$0xff]
        %v220 = vld [vmem:[#allocation5 + $0x90] sm:$0xff]
        %v221 = vld [vmem:[#allocation5 + $0x98] sm:$0xff]
        %v222 = vld [vmem:[#allocation5 + $0xa0] sm:$0xff]
        %v223 = vld [vmem:[#allocation5 + $0xa8] sm:$0xff]
        %v224 = vld [vmem:[#allocation5 + $0xb0] sm:$0xff]
        %v225 = vld [vmem:[#allocation5 + $0xb8] sm:$0xff]
        %v226 = vld [vmem:[#allocation5 + $0xc0] sm:$0xff]
        %v227 = vld [vmem:[#allocation5 + $0xc8] sm:$0xff]
        %v228 = vld [vmem:[#allocation5 + $0xd0] sm:$0xff]
        %v229 = vld [vmem:[#allocation5 + $0xd8] sm:$0xff]
        %v230 = vld [vmem:[#allocation5 + $0xe0] sm:$0xff]
        %v231 = vld [vmem:[#allocation5 + $0xe8] sm:$0xff]
        %v232 = vld [vmem:[#allocation5 + $0xf0] sm:$0xff]
        %v233 = vld [vmem:[#allocation5 + $0xf8] sm:$0xff]
        %v234 = vld [vmem:[%s2] sm:$0x3]
        %v236 = vlaneseq
        %v237 = vshrl.u32 %v236, 7
        %v238 = vsub.s32 0, %v237
        %v239 = vrot.slane %v234, %v238
        %v240 = vlaneseq
        %v241 = vshrl.u32 %v240, 7
        %v242 = vsub.s32 1, %v241
        %v243 = vrot.slane %v234, %v242
        %246 = vmatprep.subr.mxu0 %v203
        %247 = vmatpush1.msra.mxu0 %v202
        %248 = vmatprep.subr.mxu0 %v205
        %249 = vmatpush1.msra.mxu0 %v204
        %250 = vmatprep.subr.mxu0 %v207
        %251 = vmatpush1.msra.mxu0 %v206
        %252 = vmatprep.subr.mxu0 %v209
        %253 = vmatpush1.msra.mxu0 %v208
        %254 = vmatprep.subr.mxu0 %v211
        %255 = vmatpush1.msra.mxu0 %v210
        %256 = vmatprep.subr.mxu0 %v213
        %257 = vmatpush1.msra.mxu0 %v212
        %258 = vmatprep.subr.mxu0 %v215
        %259 = vmatpush1.msra.mxu0 %v214
        %260 = vmatprep.subr.mxu0 %v217
        %261 = vmatpush1.msra.mxu0 %v216
        %262 = vmatprep.subr.mxu0 %v219
        %263 = vmatpush1.msra.mxu0 %v218
        %264 = vmatprep.subr.mxu0 %v221
        %265 = vmatpush1.msra.mxu0 %v220
        %266 = vmatprep.subr.mxu0 %v223
        %267 = vmatpush1.msra.mxu0 %v222
        %268 = vmatprep.subr.mxu0 %v225
        %269 = vmatpush1.msra.mxu0 %v224
        %270 = vmatprep.subr.mxu0 %v227
        %271 = vmatpush1.msra.mxu0 %v226
        %272 = vmatprep.subr.mxu0 %v229
        %273 = vmatpush1.msra.mxu0 %v228
        %274 = vmatprep.subr.mxu0 %v231
        %275 = vmatpush1.msra.mxu0 %v230
        %276 = vmatprep.subr.mxu0 %v233
        %277 = vmatpush1.msra.mxu0 %v232
        %278 = vmatprep.subr.mxu0 0.0
        %279 = vmatpush1.msra.mxu0 0.0
        %280 = vmatprep.subr.mxu0 0.0
        %281 = vmatpush1.msra.mxu0 0.0
        %282 = vmatprep.subr.mxu0 0.0
        %283 = vmatpush1.msra.mxu0 0.0
        %284 = vmatprep.subr.mxu0 0.0
        %285 = vmatpush1.msra.mxu0 0.0
        %286 = vmatprep.subr.mxu0 0.0
        %287 = vmatpush1.msra.mxu0 0.0
        %288 = vmatprep.subr.mxu0 0.0
        %289 = vmatpush1.msra.mxu0 0.0
        %290 = vmatprep.subr.mxu0 0.0
        %291 = vmatpush1.msra.mxu0 0.0
        %292 = vmatprep.subr.mxu0 0.0
        %293 = vmatpush1.msra.mxu0 0.0
        %294 = vmatprep.subr.mxu0 0.0
        %295 = vmatpush1.msra.mxu0 0.0
        %296 = vmatprep.subr.mxu0 0.0
        %297 = vmatpush1.msra.mxu0 0.0
        %298 = vmatprep.subr.mxu0 0.0
        %299 = vmatpush1.msra.mxu0 0.0
        %300 = vmatprep.subr.mxu0 0.0
        %301 = vmatpush1.msra.mxu0 0.0
        %302 = vmatprep.subr.mxu0 0.0
        %303 = vmatpush1.msra.mxu0 0.0
        %304 = vmatprep.subr.mxu0 0.0
        %305 = vmatpush1.msra.mxu0 0.0
        %306 = vmatprep.subr.mxu0 0.0
        %307 = vmatpush1.msra.mxu0 0.0
        %308 = vmatprep.subr.mxu0 0.0
        %309 = vmatpush1.msra.mxu0 0.0
        %310 = vmatprep.mubr.f32.mxu0 0.0
        %311 = vmatmul.mubr.f32.gmra.mrb[0].mxu0 %v201
        %v312 = vpop.f32.mrb[0].mxu0
        %v313 = vadd.f32 %v239, %v312
        %v314 = vpop.f32.mrb[0].mxu0
        %v315 = vadd.f32 %v243, %v314
        %316 = vdwg.mxu0
        %v317 = vxor.u32 %v313, 2147483648
        %v318 = vmul.f32 %v317, 1.442695
        %v319 = vpow.pop %v318
        %v320 = vadd.f32 %v319, 1.0
        %v321 = vrcp.pop %v320
        %v322 = vmul.f32 1.0, %v321
        %v323 = vsub.f32 %v315, %v201
        %v324 = vmul.f32 %v322, %v323
        %v325 = vadd.f32 %v201, %v324
        %s326 = scalar_lea.vmem [#allocation5], 256
        %v327 = vld [vmem:[%s326] sm:$0xff]
        %v328 = vld [vmem:[%s326 + $0x8] sm:$0xff]
        %v329 = vld [vmem:[%s326 + $0x10] sm:$0xff]
        %v330 = vld [vmem:[%s326 + $0x18] sm:$0xff]
        %v331 = vld [vmem:[%s326 + $0x20] sm:$0xff]
        %v332 = vld [vmem:[%s326 + $0x28] sm:$0xff]
        %v333 = vld [vmem:[%s326 + $0x30] sm:$0xff]
        %v334 = vld [vmem:[%s326 + $0x38] sm:$0xff]
        %v335 = vld [vmem:[%s326 + $0x40] sm:$0xff]
        %v336 = vld [vmem:[%s326 + $0x48] sm:$0xff]
        %v337 = vld [vmem:[%s326 + $0x50] sm:$0xff]
        %v338 = vld [vmem:[%s326 + $0x58] sm:$0xff]
        %v339 = vld [vmem:[%s326 + $0x60] sm:$0xff]
        %v340 = vld [vmem:[%s326 + $0x68] sm:$0xff]
        %v341 = vld [vmem:[%s326 + $0x70] sm:$0xff]
        %v342 = vld [vmem:[%s326 + $0x78] sm:$0xff]
        %v343 = vld [vmem:[%s326 + $0x80] sm:$0xff]
        %v344 = vld [vmem:[%s326 + $0x88] sm:$0xff]
        %v345 = vld [vmem:[%s326 + $0x90] sm:$0xff]
        %v346 = vld [vmem:[%s326 + $0x98] sm:$0xff]
        %v347 = vld [vmem:[%s326 + $0xa0] sm:$0xff]
        %v348 = vld [vmem:[%s326 + $0xa8] sm:$0xff]
        %v349 = vld [vmem:[%s326 + $0xb0] sm:$0xff]
        %v350 = vld [vmem:[%s326 + $0xb8] sm:$0xff]
        %v351 = vld [vmem:[%s326 + $0xc0] sm:$0xff]
        %v352 = vld [vmem:[%s326 + $0xc8] sm:$0xff]
        %v353 = vld [vmem:[%s326 + $0xd0] sm:$0xff]
        %v354 = vld [vmem:[%s326 + $0xd8] sm:$0xff]
        %v355 = vld [vmem:[%s326 + $0xe0] sm:$0xff]
        %v356 = vld [vmem:[%s326 + $0xe8] sm:$0xff]
        %v357 = vld [vmem:[%s326 + $0xf0] sm:$0xff]
        %v358 = vld [vmem:[%s326 + $0xf8] sm:$0xff]
        %s359 = scalar_lea.vmem %s2, 2
        %v360 = vld [vmem:[%s359] sm:$0x3]
        %v362 = vlaneseq
        %v363 = vshrl.u32 %v362, 7
        %v364 = vsub.s32 0, %v363
        %v365 = vrot.slane %v360, %v364
        %v366 = vlaneseq
        %v367 = vshrl.u32 %v366, 7
        %v368 = vsub.s32 1, %v367
        %v369 = vrot.slane %v360, %v368
        %372 = vmatprep.subr.mxu0 %v328
        %373 = vmatpush1.msra.mxu0 %v327
        %374 = vmatprep.subr.mxu0 %v330
        %375 = vmatpush1.msra.mxu0 %v329
        %376 = vmatprep.subr.mxu0 %v332
        %377 = vmatpush1.msra.mxu0 %v331
        %378 = vmatprep.subr.mxu0 %v334
        %379 = vmatpush1.msra.mxu0 %v333
        %380 = vmatprep.subr.mxu0 %v336
        %381 = vmatpush1.msra.mxu0 %v335
        %382 = vmatprep.subr.mxu0 %v338
        %383 = vmatpush1.msra.mxu0 %v337
        %384 = vmatprep.subr.mxu0 %v340
        %385 = vmatpush1.msra.mxu0 %v339
        %386 = vmatprep.subr.mxu0 %v342
        %387 = vmatpush1.msra.mxu0 %v341
        %388 = vmatprep.subr.mxu0 %v344
        %389 = vmatpush1.msra.mxu0 %v343
        %390 = vmatprep.subr.mxu0 %v346
        %391 = vmatpush1.msra.mxu0 %v345
        %392 = vmatprep.subr.mxu0 %v348
        %393 = vmatpush1.msra.mxu0 %v347
        %394 = vmatprep.subr.mxu0 %v350
        %395 = vmatpush1.msra.mxu0 %v349
        %396 = vmatprep.subr.mxu0 %v352
        %397 = vmatpush1.msra.mxu0 %v351
        %398 = vmatprep.subr.mxu0 %v354
        %399 = vmatpush1.msra.mxu0 %v353
        %400 = vmatprep.subr.mxu0 %v356
        %401 = vmatpush1.msra.mxu0 %v355
        %402 = vmatprep.subr.mxu0 %v358
        %403 = vmatpush1.msra.mxu0 %v357
        %404 = vmatprep.subr.mxu0 0.0
        %405 = vmatpush1.msra.mxu0 0.0
        %406 = vmatprep.subr.mxu0 0.0
        %407 = vmatpush1.msra.mxu0 0.0
        %408 = vmatprep.subr.mxu0 0.0
        %409 = vmatpush1.msra.mxu0 0.0
        %410 = vmatprep.subr.mxu0 0.0
        %411 = vmatpush1.msra.mxu0 0.0
        %412 = vmatprep.subr.mxu0 0.0
        %413 = vmatpush1.msra.mxu0 0.0
        %414 = vmatprep.subr.mxu0 0.0
        %415 = vmatpush1.msra.mxu0 0.0
        %416 = vmatprep.subr.mxu0 0.0
        %417 = vmatpush1.msra.mxu0 0.0
        %418 = vmatprep.subr.mxu0 0.0
        %419 = vmatpush1.msra.mxu0 0.0
        %420 = vmatprep.subr.mxu0 0.0
        %421 = vmatpush1.msra.mxu0 0.0
        %422 = vmatprep.subr.mxu0 0.0
        %423 = vmatpush1.msra.mxu0 0.0
        %424 = vmatprep.subr.mxu0 0.0
        %425 = vmatpush1.msra.mxu0 0.0
        %426 = vmatprep.subr.mxu0 0.0
        %427 = vmatpush1.msra.mxu0 0.0
        %428 = vmatprep.subr.mxu0 0.0
        %429 = vmatpush1.msra.mxu0 0.0
        %430 = vmatprep.subr.mxu0 0.0
        %431 = vmatpush1.msra.mxu0 0.0
        %432 = vmatprep.subr.mxu0 0.0
        %433 = vmatpush1.msra.mxu0 0.0
        %434 = vmatprep.subr.mxu0 0.0
        %435 = vmatpush1.msra.mxu0 0.0
        %436 = vmatprep.mubr.f32.mxu0 0.0
        %437 = vmatmul.mubr.f32.gmra.mrb[0].mxu0 %v325
        %v438 = vpop.f32.mrb[0].mxu0
        %v439 = vadd.f32 %v365, %v438
        %v440 = vpop.f32.mrb[0].mxu0
        %v441 = vadd.f32 %v369, %v440
        %442 = vdwg.mxu0
        %v443 = vxor.u32 %v439, 2147483648
        %v444 = vmul.f32 %v443, 1.442695
        %v445 = vpow.pop %v444
        %v446 = vadd.f32 %v445, 1.0
        %v447 = vrcp.pop %v446
        %v448 = vmul.f32 1.0, %v447
        %v449 = vsub.f32 %v441, %v325
        %v450 = vmul.f32 %v448, %v449
        %v451 = vadd.f32 %v325, %v450
        %452 = vst [vmem:[%s200] sm:$0xff] %v451
        %s453 = sand.u32 %s97, 1
        %s454 = scalar_lea.sflag [#allocation4], %s453
        %s455 = sand.u32 %s97, 1
        %s456 = smul.addr %s455, 8
        %s457 = scalar_lea.vmem [#allocation7], %s456
        // Predicated region
        $region41: #{tpu_custom_call.1} parent=31 // pred_check
          %p458 = pneg %p107
        $region42: #{tpu_custom_call.1} parent=31 // pred_check_branch
          %460 = sbr.rel (%p458) target = $region44
        $region43: #{tpu_custom_call.1} parent=31 // pred_region
          %s462 = ssub.s32 128, 128
          %463 = vsyncadd %s454, %s462
          %s464 = smul.addr %s21, 128
          %s465 = scalar_lea.hbm %s3, %s464
          %s467 = sshll.u32 %s457, 4
          %s468 = int_to_ptr.vmem [resolvable:$true] %s467
          %470 = dma.vmem_to_hbm [thread:$0]  %s468, 128, %s465, %s454
        $region44: #{tpu_custom_call.1} parent=31 // pred_fallthru
          _
      $region32: #{tpu_custom_call.1} parent=5 // pred_fallthru
        _
      %p471 = scmp.le.s32.totalorder 2, %s16
      // Predicated region
      $region45: #{tpu_custom_call.1} parent=5 // pred_check
        %p472 = pneg %p471
      $region46: #{tpu_custom_call.1} parent=5 // pred_check_branch
        %474 = sbr.rel (%p472) target = $region48
      $region47: #{tpu_custom_call.1} parent=5 // pred_region
        %s475 = ssub.s32 %s16, 2
        // Predicated region
        $region49: #{tpu_custom_call.1} parent=47 // pred_check
          %p476 = pneg %p113
        $region50: #{tpu_custom_call.1} parent=47 // pred_check_branch
          %478 = sbr.rel (%p476) target = $region52
        $region51: #{tpu_custom_call.1} parent=47 // pred_region
          %s479 = sand.u32 %s98, 1
          %s480 = scalar_lea.sflag [#allocation4], %s479
          %s481 = sand.u32 %s98, 1
          %s482 = smul.addr %s481, 8
          %s483 = scalar_lea.vmem [#allocation7], %s482
          %484 = dma.done %s480, 128
        $region52: #{tpu_custom_call.1} parent=47 // pred_fallthru
          _
      $region48: #{tpu_custom_call.1} parent=5 // pred_fallthru
        _
    $region6: #{tpu_custom_call.1} parent=1 // loop_footer
      %s20 = sadd.s32 1, %s16
    $region7: #{tpu_custom_call.1} parent=1 // loop_footer_branch
      %15 = sbr.rel target = $region3
    $region8: #{tpu_custom_call.1} parent=1 // loop_exit
      _
    %485 = vsyncpa [#allocation3], 1
    %s486 = scalar_lea.sflag [#allocation3], 1
    %487 = vsyncpa %s486, 1
    %488 = vsyncpa [#allocation6], 1
    %489 = vsyncpa [#allocation4], 1
    %s490 = scalar_lea.sflag [#allocation4], 1
    %491 = vsyncpa %s490, 1

</llo_original>
